<compile_context>
chip_gen: v7x
topology: tpu7x:2x2x1
jax: 0.10.0
libtpu: 0.0.40
codegen_flags: <defaults>
</compile_context>

<pallas_src>
import math
import numpy as np
import jax
import jax.numpy as jnp
from jax.experimental import pallas as pl
from jax.experimental.pallas import tpu as pltpu


def _matmul_dtype():
    try:
        if jax.devices()[0].platform == "tpu":
            return jnp.bfloat16
    except Exception:
        pass
    return jnp.float32


MATMUL_DTYPE = _matmul_dtype()


def _tile_budget_bytes():
    kind = ""
    try:
        kind = jax.devices()[0].device_kind.lower()
    except Exception:
        pass
    # v7x has 64 MiB physical VMEM (32 MiB scoped default): stay conservative.
    return (2 << 20) if "7" in kind else (4 << 20)


def _sublane_align(dtype):
    """Second-to-last block-dim alignment: 8 (f32), 16 (bf16), 32 (int8)."""
    return max(8, 32 // jnp.dtype(dtype).itemsize)


# --------------------------------------------------------------------------
# Host-side matrix construction
# --------------------------------------------------------------------------
def _bilinear_matrix_align_corners(out_size, in_size):
    """Row-stochastic (out_size, in_size) matrix reproducing
    F.interpolate(..., mode='bilinear', align_corners=True) along one axis."""
    M = np.zeros((out_size, in_size), dtype=np.float32)
    for i in range(out_size):
        src = 0.0 if out_size == 1 else i * (in_size - 1) / (out_size - 1)
        i0 = min(int(math.floor(src)), in_size - 1)
        i1 = min(i0 + 1, in_size - 1)
        w1 = src - i0
        M[i, i0] += 1.0 - w1
        M[i, i1] += w1
    return M


def _conv1d_matrix(n):
    """(n, n) matrix of the zero-padded 1D conv with taps [0.25, 0.5, 0.25]."""
    M = np.zeros((n, n), dtype=np.float32)
    for i in range(n):
        M[i, i] = 0.5
        if i > 0:
            M[i, i - 1] = 0.25
        if i < n - 1:
            M[i, i + 1] = 0.25
    return M


def _pick_tile(n, row_bytes, align, budget):
    """Largest tile t of an axis of length n such that either t == n, or
    (n % t == 0 and t % align == 0), keeping t * row_bytes <= budget."""
    cap = max(align, budget // max(row_bytes, 1))
    if n <= cap:
        return n
    t = (cap // align) * align
    while t >= align:
        if n % t == 0:
            return t
        t -= align
    return n  # no aligned divisor found; fall back to the whole axis


# --------------------------------------------------------------------------
# Pass 1: fused downsample + 3x Gaussian (folded into Ah / Aw^T)
# Emits a per-(bc, H-tile) partial sum: part[bc, t] = Ah[:, t] @ x[bc, t] @ Aw^T
# --------------------------------------------------------------------------
def _downsample_gauss_kernel(x_ref, aht_ref, awt_ref, part_ref):
    x = x_ref[0].astype(MATMUL_DTYPE)                          # (TH, W)
    aht = aht_ref[...].astype(MATMUL_DTYPE)                    # (TH, hs)
    # rows[i, w] = sum_t ah[i, t_off + t] * x[t, w]   (lane-dense: N = W)
    rows = jax.lax.dot_general(
        aht, x,
        dimension_numbers=(((0,), (0,)), ((), ())),
        preferred_element_type=jnp.float32)                    # (hs, W)
    part_ref[0, 0] = jnp.dot(rows.astype(MATMUL_DTYPE), awt_ref[...],
                             preferred_element_type=jnp.float32)  # (hs, ws)


# --------------------------------------------------------------------------
# Pass 2: W-axis bilinear upsample of the (normalized, H-upsampled) "wide"
# tensor: out[bc, i, j] = wide[bc, i_tile] @ Uw^T[:, j_tile]
# --------------------------------------------------------------------------
def _upsample_kernel(wide_ref, uwt_ref, out_ref):
    w = wide_ref[0].astype(MATMUL_DTYPE)                       # (TOH, ws)
    out_ref[0] = jnp.dot(w, uwt_ref[...],
                         preferred_element_type=jnp.float32
                         ).astype(out_ref.dtype)               # (TOH, TW)


# --------------------------------------------------------------------------
# Wrapper
# --------------------------------------------------------------------------
def gauss_filter(x):
    B, C, H, W = x.shape
    assert C == 3, "GaussFilter is defined for 3-channel inputs"
    hs, ws = H // 32, W // 32
    assert hs >= 1 and ws >= 1, "H and W must be >= 32"

    tile_budget = _tile_budget_bytes()

    # Fold the 3 separable Gaussian convs (tridiagonal Ch/Cw, zero padding)
    # into the bilinear downsample matrices (associativity of the linear ops).
    dh = _bilinear_matrix_align_corners(hs, H)                 # (hs, H)
    dw = _bilinear_matrix_align_corners(ws, W)                 # (ws, W)
    uh = _bilinear_matrix_align_corners(H, hs)                 # (H, hs)
    uw = _bilinear_matrix_align_corners(W, ws)                 # (W, ws)
    ch3 = np.linalg.matrix_power(_conv1d_matrix(hs), 3)        # (hs, hs)
    cw3 = np.linalg.matrix_power(_conv1d_matrix(ws), 3)        # (ws, ws)

    aht = jnp.asarray((ch3 @ dh).T, dtype=jnp.float32)         # (H, hs)  f32 (cast in-kernel)
    awt = jnp.asarray((cw3 @ dw).T, dtype=MATMUL_DTYPE)        # (W, ws)
    uh_j = jnp.asarray(uh, dtype=jnp.float32)                  # (H, hs)
    uwt = jnp.asarray(uw.T, dtype=MATMUL_DTYPE)                # (ws, W)

    BC = B * C
    x_flat = x.reshape(BC, H, W)                               # native dtype

    # ---- Pass 1: downsample + Gaussian, gridded over (B*C, H tiles). ----
    x_itemsize = jnp.dtype(x.dtype).itemsize
    th_align = _sublane_align(x.dtype)
    TH = _pick_tile(H, row_bytes=W * x_itemsize, align=th_align,
                    budget=tile_budget)
    n_t = H // TH
    partials = pl.pallas_call(
        _downsample_gauss_kernel,
        out_shape=jax.ShapeDtypeStruct((BC, n_t, hs, ws), jnp.float32),
        grid=(BC, n_t),
        in_specs=[
            pl.BlockSpec((1, TH, W), lambda bc, t: (bc, t, 0)),
            pl.BlockSpec((TH, hs), lambda bc, t: (t, 0)),
            pl.BlockSpec((W, ws), lambda bc, t: (0, 0)),
        ],
        out_specs=pl.BlockSpec((1, 1, hs, ws), lambda bc, t: (bc, t, 0, 0)),
        compiler_params=pltpu.CompilerParams(
            dimension_semantics=("parallel", "parallel"),
            vmem_limit_bytes=32 * 1024 * 1024),
    )(x_flat, aht, awt)

    # ---- Tiny intermediate work in plain JAX (fused by XLA): partial-sum
    # reduce, global min/max normalize, and the H-axis upsample. ----
    small = jnp.sum(partials, axis=1)                          # (BC, hs, ws)
    mn = jnp.min(small)
    mx = jnp.max(small)
    small_norm = (small - mn) * (1.0 / (mx - mn + 1e-8))
    wide = jnp.einsum('Hh,bhw->bHw', uh_j, small_norm)         # (BC, H, ws) f32

    # ---- Pass 2: W-axis upsample, gridded over (B*C, H tiles, W tiles). ----
    TW = _pick_tile(W, row_bytes=4, align=128, budget=2048 * 4)
    TOH = _pick_tile(H, row_bytes=TW * 4, align=8, budget=tile_budget)
    out_flat = pl.pallas_call(
        _upsample_kernel,
        out_shape=jax.ShapeDtypeStruct((BC, H, W), jnp.float32),
        grid=(BC, H // TOH, W // TW),
        in_specs=[
            pl.BlockSpec((1, TOH, ws), lambda bc, i, j: (bc, i, 0)),
            pl.BlockSpec((ws, TW), lambda bc, i, j: (0, j)),
        ],
        out_specs=pl.BlockSpec((1, TOH, TW), lambda bc, i, j: (bc, i, j)),
        compiler_params=pltpu.CompilerParams(
            dimension_semantics=("parallel", "parallel", "parallel"),
            vmem_limit_bytes=32 * 1024 * 1024),
    )(wide, uwt)

    return out_flat.reshape(B, C, H, W)


# --------------------------------------------------------------------------
# Pure-JAX f32 reference (unfused: downsample, 3 separate convs, normalize, up)
# --------------------------------------------------------------------------
def gauss_filter_ref(x):
    B, C, H, W = x.shape
    hs, ws = H // 32, W // 32
    dh = jnp.asarray(_bilinear_matrix_align_corners(hs, H))
    dw = jnp.asarray(_bilinear_matrix_align_corners(ws, W))
    uh = jnp.asarray(_bilinear_matrix_align_corners(H, hs))
    uw = jnp.asarray(_bilinear_matrix_align_corners(W, ws))
    ch = jnp.asarray(_conv1d_matrix(hs))
    cw = jnp.asarray(_conv1d_matrix(ws))
    s = jnp.einsum('iH,bcHW,jW->bcij', dh, x.astype(jnp.float32), dw)
    for _ in range(3):
        s = jnp.einsum('iI,bcIJ,jJ->bcij', ch, s, cw)
    s = (s - s.min()) / (s.max() - s.min() + 1e-8)
    return jnp.einsum('Ii,bcij,Jj->bcIJ', uh, s, uw)


if __name__ == "__main__":
    key = jax.random.PRNGKey(0)
    # H, W must be >= 32 so H//32, W//32 >= 1 (as the PyTorch forward implies).
    B, C, H, W = 2, 3, 64, 64
    x = jax.random.normal(key, (B, C, H, W), dtype=jnp.float32)

    out = jax.block_until_ready(jax.jit(gauss_filter)(x))
    ref = jax.block_until_ready(gauss_filter_ref(x))

    assert out.shape == (B, C, H, W)
    assert bool(jnp.all(jnp.isfinite(out)))
    # bf16 MXU inputs (f32 accumulation): typical error ~1e-3; the min-max
    # normalization can amplify the worst-case element toward ~1e-2.
    assert bool(jnp.allclose(out, ref, rtol=2e-2, atol=2e-2))
    print("KERNEL_OK")
</pallas_src>

<mosaic_0001>
module attributes {stable_mosaic.version = 11 : i64} {
  func.func @_downsample_gauss_kernel(%arg0: i32, %arg1: i32, %arg2: memref<1x64x64xf32, #tpu.memory_space<vmem>>, %arg3: memref<64x2xf32, #tpu.memory_space<vmem>>, %arg4: memref<64x2xf32, #tpu.memory_space<vmem>>, %arg5: memref<1x1x2x2xf32, #tpu.memory_space<vmem>>) attributes {dimension_semantics = [#tpu.dimension_semantics<parallel>, #tpu.dimension_semantics<parallel>], iteration_bounds = array<i64: 6, 1>, scalar_prefetch = 0 : i64, scratch_operands = 0 : i64, tpu.core_type = #tpu.core_type<tc>, window_params = [{transform_indices = @transform_0, window_bounds = array<i64: 1, 64, 64>}, {transform_indices = @transform_1, window_bounds = array<i64: 64, 2>}, {pipeline_mode = #tpu.pipeline_mode<synchronous>, transform_indices = @transform_2, window_bounds = array<i64: 64, 2>}, {transform_indices = @transform_3, window_bounds = array<i64: 1, 1, 2, 2>}]} {
    %c0 = arith.constant 0 : index
    %c0_0 = arith.constant 0 : index
    %c0_1 = arith.constant 0 : index
    %0 = vector.load %arg2[%c0, %c0_0, %c0_1] : memref<1x64x64xf32, #tpu.memory_space<vmem>>, vector<1x64x64xf32>
    %1 = vector.shape_cast %0 : vector<1x64x64xf32> to vector<64x64xf32>
    %c0_2 = arith.constant 0 : index
    %c0_3 = arith.constant 0 : index
    %2 = vector.load %arg3[%c0_2, %c0_3] : memref<64x2xf32, #tpu.memory_space<vmem>>, vector<64x2xf32>
    %cst = arith.constant dense<0.000000e+00> : vector<2x64xf32>
    %3 = tpu.matmul %2, %1, %cst {dimension_numbers = #tpu.dot_dimension_numbers<[0], [0], [1], [1], [0, 1, 1, 1], [], []>} : vector<64x2xf32>, vector<64x64xf32>, vector<2x64xf32> -> vector<2x64xf32>
    %c0_4 = arith.constant 0 : index
    %c0_5 = arith.constant 0 : index
    %4 = vector.load %arg4[%c0_4, %c0_5] : memref<64x2xf32, #tpu.memory_space<vmem>>, vector<64x2xf32>
    %cst_6 = arith.constant dense<0.000000e+00> : vector<2x2xf32>
    %5 = tpu.matmul %3, %4, %cst_6 {dimension_numbers = #tpu.dot_dimension_numbers<[1], [0], [0], [1], [0, 0, 1, 1], [], []>} : vector<2x64xf32>, vector<64x2xf32>, vector<2x2xf32> -> vector<2x2xf32>
    %c0_7 = arith.constant 0 : index
    %c0_8 = arith.constant 0 : index
    %c0_9 = arith.constant 0 : index
    %c0_10 = arith.constant 0 : index
    %6 = vector.load %arg5[%c0_7, %c0_8, %c0_9, %c0_10] : memref<1x1x2x2xf32, #tpu.memory_space<vmem>>, vector<1x1x2x2xf32>
    %7 = vector.shape_cast %6 : vector<1x1x2x2xf32> to vector<2x2xf32>
    %8 = vector.shape_cast %5 : vector<2x2xf32> to vector<1x1x2x2xf32>
    tpu.vector_store %arg5[%c0_7, %c0_8, %c0_9, %c0_10], %8 {strides = array<i32>} : memref<1x1x2x2xf32, #tpu.memory_space<vmem>>, vector<1x1x2x2xf32>,
    return
  }
  func.func @transform_0(%arg0: i32, %arg1: i32) -> (i32, i32, i32) {
    %c0_i32 = arith.constant 0 : i32
    %c0_i32_0 = arith.constant 0 : i32
    return %arg0, %arg1, %c0_i32 : i32, i32, i32
  }
  func.func @transform_1(%arg0: i32, %arg1: i32) -> (i32, i32) {
    %c0_i32 = arith.constant 0 : i32
    %c0_i32_0 = arith.constant 0 : i32
    return %arg1, %c0_i32 : i32, i32
  }
  func.func @transform_2(%arg0: i32, %arg1: i32) -> (i32, i32) {
    %c0_i32 = arith.constant 0 : i32
    %c0_i32_0 = arith.constant 0 : i32
    %c0_i32_1 = arith.constant 0 : i32
    return %c0_i32, %c0_i32_0 : i32, i32
  }
  func.func @transform_3(%arg0: i32, %arg1: i32) -> (i32, i32, i32, i32) {
    %c0_i32 = arith.constant 0 : i32
    %c0_i32_0 = arith.constant 0 : i32
    %c0_i32_1 = arith.constant 0 : i32
    return %arg0, %arg1, %c0_i32, %c0_i32_0 : i32, i32, i32, i32
  }
}

module attributes {stable_mosaic.version = 11 : i64} {
  func.func @_upsample_kernel(%arg0: i32, %arg1: i32, %arg2: i32, %arg3: memref<1x64x2xf32, #tpu.memory_space<vmem>>, %arg4: memref<2x64xf32, #tpu.memory_space<vmem>>, %arg5: memref<1x64x64xf32, #tpu.memory_space<vmem>>) attributes {dimension_semantics = [#tpu.dimension_semantics<parallel>, #tpu.dimension_semantics<parallel>, #tpu.dimension_semantics<parallel>], iteration_bounds = array<i64: 6, 1, 1>, scalar_prefetch = 0 : i64, scratch_operands = 0 : i64, tpu.core_type = #tpu.core_type<tc>, window_params = [{transform_indices = @transform_0, window_bounds = array<i64: 1, 64, 2>}, {transform_indices = @transform_1, window_bounds = array<i64: 2, 64>}, {transform_indices = @transform_2, window_bounds = array<i64: 1, 64, 64>}]} {
    %c0 = arith.constant 0 : index
    %c0_0 = arith.constant 0 : index
    %c0_1 = arith.constant 0 : index
    %0 = vector.load %arg3[%c0, %c0_0, %c0_1] : memref<1x64x2xf32, #tpu.memory_space<vmem>>, vector<1x64x2xf32>
    %1 = vector.shape_cast %0 : vector<1x64x2xf32> to vector<64x2xf32>
    %c0_2 = arith.constant 0 : index
    %c0_3 = arith.constant 0 : index
    %2 = vector.load %arg4[%c0_2, %c0_3] : memref<2x64xf32, #tpu.memory_space<vmem>>, vector<2x64xf32>
    %cst = arith.constant dense<0.000000e+00> : vector<64x64xf32>
    %3 = tpu.matmul %1, %2, %cst {dimension_numbers = #tpu.dot_dimension_numbers<[1], [0], [0], [1], [0, 0, 1, 1], [], []>} : vector<64x2xf32>, vector<2x64xf32>, vector<64x64xf32> -> vector<64x64xf32>
    %c0_4 = arith.constant 0 : index
    %c0_5 = arith.constant 0 : index
    %c0_6 = arith.constant 0 : index
    %4 = vector.load %arg5[%c0_4, %c0_5, %c0_6] : memref<1x64x64xf32, #tpu.memory_space<vmem>>, vector<1x64x64xf32>
    %5 = vector.shape_cast %4 : vector<1x64x64xf32> to vector<64x64xf32>
    %6 = vector.shape_cast %3 : vector<64x64xf32> to vector<1x64x64xf32>
    tpu.vector_store %arg5[%c0_4, %c0_5, %c0_6], %6 {strides = array<i32>} : memref<1x64x64xf32, #tpu.memory_space<vmem>>, vector<1x64x64xf32>,
    return
  }
  func.func @transform_0(%arg0: i32, %arg1: i32, %arg2: i32) -> (i32, i32, i32) {
    %c0_i32 = arith.constant 0 : i32
    %c0_i32_0 = arith.constant 0 : i32
    return %arg0, %arg1, %c0_i32 : i32, i32, i32
  }
  func.func @transform_1(%arg0: i32, %arg1: i32, %arg2: i32) -> (i32, i32) {
    %c0_i32 = arith.constant 0 : i32
    %c0_i32_0 = arith.constant 0 : i32
    return %c0_i32, %arg2 : i32, i32
  }
  func.func @transform_2(%arg0: i32, %arg1: i32, %arg2: i32) -> (i32, i32, i32) {
    %c0_i32 = arith.constant 0 : i32
    return %arg0, %arg1, %arg2 : i32, i32, i32
  }
}

</mosaic_0001>

<llo_original>
// kernel: gauss_filter.2
$region0: #{gauss_filter.2}
  #allocation0 [shape = 'u32[]', space=smem, size = 0x4, offset = 0x4, fixed_abs, tag = 'smem constant byte address 0x4 - core index']
  #allocation1 [shape = 'u32[144,128]{1,0:T(1,128)}', space=vmem, size = 0x12000, scoped, tag = 'internal scratch']
  %s0 = inlined_call_operand.hbm [shape: f32[6,64,64], index: 0, kind: input, shape index: {}]
  %s1 = inlined_call_operand.hbm [shape: f32[64,2], index: 1, kind: input, shape index: {}, may-alias: {1,2}]
  %s2 = inlined_call_operand.hbm [shape: f32[64,2], index: 2, kind: input, shape index: {}, may-alias: {1,2}]
  %s3 = inlined_call_operand.vmem [shape: f32[6,1,2,2], index: 3, kind: output, shape index: {}]
  %s4 = sld [smem:[#allocation0]]
  $region57: #{gauss_filter.2} parent=0
    _
  %s6 = ssub.s32 1, %s4
  %s7 = scalar_select 0, %s6, %s4
  $region1: #{gauss_filter.2} parent=0
    #allocation2 [shape = 'u8[65536]{0}', space=vmem, size = 0x10000, scoped, tag = 'input window, operand 0']
    #allocation3 [shape = 's32[2]{0}', space=sflag, size = 0x8, scoped, tag = 'scoped memory for gauss_filter.2']
    #allocation4 [shape = 'u8[32768]{0}', space=vmem, size = 0x8000, scoped, tag = 'input window, operand 1, single buffered']
    #allocation5 [shape = 's32[1]{0}', space=sflag, size = 0x4, scoped, tag = 'scoped memory for gauss_filter.2']
    #allocation6 [shape = 'u8[32768]{0}', space=vmem, size = 0x8000, scoped, tag = 'input window, operand 2, single buffered']
    %8 = vsyncpa [#allocation3], 0
    %s9 = scalar_lea.sflag [#allocation3], 1
    %10 = vsyncpa %s9, 0
    %11 = vsyncpa [#allocation5], 0
    loop: start=0, step=1, limit=8
    $region2: #{gauss_filter.2} parent=1 // loop_pre_header
      _
    $region3: #{gauss_filter.2} parent=1 // loop_header
      %s13 = sphi 0, %s17
      %p14 = scmp.ge.s32.totalorder %s13, 8
      %s20 = sphi 0, %s32
      %s21 = sphi 0, %s28
      %s22 = sphi 0, %s20
      %s23 = sphi 0, %s21
      %s24 = sphi 0, %s22
      %s25 = sphi 0, %s23
      %s37 = sphi 0, %s39
      %s40 = sphi 0, %s37
      %s41 = sphi 0, %s40
      %s57 = sphi 0, %s41
      %s63 = sphi 0, %s65
      %s66 = sphi 0, %s63
      %s67 = sphi 0, %s66
      %s83 = sphi 0, %s67
      %s87 = sphi 0, %s87
      %s89 = sphi 0, %s87
      %s90 = sphi 0, %s89
      %s104 = sphi 0, %s90
      %s112 = sphi 0, %s114
      %s115 = sphi 0, %s112
      %s116 = sphi 0, %s115
      %s132 = sphi 0, %s116
    $region4: #{gauss_filter.2} parent=1 // loop_header_branch
      %16 = sbr.rel (%p14) target = $region8
    $region5: #{gauss_filter.2} parent=1 // loop_body
      %s18 = ssub.s32 %s13, 1
      %s19 = ssub.s32 %s13, 2
      %s26 = sadd.s32 1, %s21
      %p27 = scmp.ge.s32.totalorder %s26, 1
      %s28 = scalar_select %p27, 0, %s26
      %s29 = sadd.s32 1, %s20
      %s30 = scalar_select %p27, %s29, %s20
      %p31 = scmp.ge.s32.totalorder %s30, 6
      %s32 = scalar_select %p31, 0, %s30
      %s33 = ssub.s32 %s20, %s32
      %s34 = ssub.s32 %s21, %s28
      %s35 = sor.u32 %s33, %s34
      %p36 = scmp.eq.s32.totalorder %s35, 0
      %s38 = sadd.s32 %s37, 1
      %s39 = scalar_select %p36, %s37, %s38
      %p42 = pneg %p36
      %p43 = scmp.eq.s32.totalorder %s13, 5
      %p44 = por %p42, %p43
      %p45 = scmp.ne.s32.totalorder %s37, %s40
      %p46 = scmp.eq.s32.totalorder %s13, 0
      %p47 = por %p45, %p46
      %p48 = scmp.ne.s32.totalorder %s37, %s40
      %p49 = scmp.eq.s32.totalorder %s18, 5
      %p50 = por %p48, %p49
      %p51 = scmp.ne.s32.totalorder %s40, %s41
      %p52 = scmp.eq.s32.totalorder %s18, 0
      %p53 = por %p51, %p52
      %p54 = scmp.ne.s32.totalorder %s40, %s41
      %p55 = scmp.eq.s32.totalorder %s19, 5
      %p56 = por %p54, %p55
      %p58 = scmp.ne.s32.totalorder %s41, %s57
      %p59 = scmp.eq.s32.totalorder %s19, 0
      %p60 = por %p58, %p59
      %s61 = ssub.s32 %s21, %s28
      %p62 = scmp.eq.s32.totalorder %s61, 0
      %s64 = sadd.s32 %s63, 1
      %s65 = scalar_select %p62, %s63, %s64
      %p68 = pneg %p62
      %p69 = scmp.eq.s32.totalorder %s13, 5
      %p70 = por %p68, %p69
      %p71 = scmp.ne.s32.totalorder %s63, %s66
      %p72 = scmp.eq.s32.totalorder %s13, 0
      %p73 = por %p71, %p72
      %p74 = scmp.ne.s32.totalorder %s63, %s66
      %p75 = scmp.eq.s32.totalorder %s18, 5
      %p76 = por %p74, %p75
      %p77 = scmp.ne.s32.totalorder %s66, %s67
      %p78 = scmp.eq.s32.totalorder %s18, 0
      %p79 = por %p77, %p78
      %p80 = scmp.ne.s32.totalorder %s66, %s67
      %p81 = scmp.eq.s32.totalorder %s19, 5
      %p82 = por %p80, %p81
      %p84 = scmp.ne.s32.totalorder %s67, %s83
      %p85 = scmp.eq.s32.totalorder %s19, 0
      %p86 = por %p84, %p85
      %s88 = sadd.s32 %s87, 1
      %p91 = scmp.eq.s32.totalorder %s13, 5
      %p92 = scmp.ne.s32.totalorder %s87, %s89
      %p93 = scmp.eq.s32.totalorder %s13, 0
      %p94 = por %p92, %p93
      %p95 = scmp.ne.s32.totalorder %s87, %s89
      %p96 = scmp.eq.s32.totalorder %s18, 5
      %p97 = por %p95, %p96
      %p98 = scmp.ne.s32.totalorder %s89, %s90
      %p99 = scmp.eq.s32.totalorder %s18, 0
      %p100 = por %p98, %p99
      %p101 = scmp.ne.s32.totalorder %s89, %s90
      %p102 = scmp.eq.s32.totalorder %s19, 5
      %p103 = por %p101, %p102
      %p105 = scmp.ne.s32.totalorder %s90, %s104
      %p106 = scmp.eq.s32.totalorder %s19, 0
      %p107 = por %p105, %p106
      %s108 = ssub.s32 %s20, %s32
      %s109 = ssub.s32 %s21, %s28
      %s110 = sor.u32 %s108, %s109
      %p111 = scmp.eq.s32.totalorder %s110, 0
      %s113 = sadd.s32 %s112, 1
      %s114 = scalar_select %p111, %s112, %s113
      %p117 = pneg %p111
      %p118 = scmp.eq.s32.totalorder %s13, 5
      %p119 = por %p117, %p118
      %p120 = scmp.ne.s32.totalorder %s112, %s115
      %p121 = scmp.eq.s32.totalorder %s13, 0
      %p122 = por %p120, %p121
      %p123 = scmp.ne.s32.totalorder %s112, %s115
      %p124 = scmp.eq.s32.totalorder %s18, 5
      %p125 = por %p123, %p124
      %p126 = scmp.ne.s32.totalorder %s115, %s116
      %p127 = scmp.eq.s32.totalorder %s18, 0
      %p128 = por %p126, %p127
      %p129 = scmp.ne.s32.totalorder %s115, %s116
      %p130 = scmp.eq.s32.totalorder %s19, 5
      %p131 = por %p129, %p130
      %p133 = scmp.ne.s32.totalorder %s116, %s132
      %p134 = scmp.eq.s32.totalorder %s19, 0
      %p135 = por %p133, %p134
      %p136 = scmp.le.s32.totalorder 1, %s13
      %p137 = scmp.lt.s32.totalorder %s13, 7
      %p138 = pnand %p136, %p137
      %p139 = pneg %p138
      // Predicated region
      $region9: #{gauss_filter.2} parent=5 // pred_check
        _
      $region10: #{gauss_filter.2} parent=5 // pred_check_branch
        %141 = sbr.rel (%p138) target = $region12
      $region11: #{gauss_filter.2} parent=5 // pred_region
        %s142 = ssub.s32 %s13, 1
        // Predicated region
        $region13: #{gauss_filter.2} parent=11 // pred_check
          %p143 = pneg %p79
        $region14: #{gauss_filter.2} parent=11 // pred_check_branch
          %145 = sbr.rel (%p143) target = $region16
        $region15: #{gauss_filter.2} parent=11 // pred_region
          %s146 = smul.u32 8, %s23
          %s148 = ssub.s32 1024, 1024
          %149 = vsyncadd [#allocation5], %s148
          %s150 = smul.addr %s146, 128
          %s151 = scalar_lea.hbm %s1, %s150
          %s152 = sshll.u32 [#allocation4], 4
          %s153 = int_to_ptr.vmem [resolvable:$true] %s152
          %158 = dma.hbm_to_vmem [thread:$0]  %s151, 1024, %s153, [#allocation5], 128, 128, 8
        $region16: #{gauss_filter.2} parent=11 // pred_fallthru
          _
        // Predicated region
        $region17: #{gauss_filter.2} parent=11 // pred_check
          %p159 = pneg %p100
        $region18: #{gauss_filter.2} parent=11 // pred_check_branch
          %161 = sbr.rel (%p159) target = $region20
        $region19: #{gauss_filter.2} parent=11 // pred_region
          %s163 = ssub.s32 1024, 1024
          %164 = vsyncadd [#allocation5], %s163
          %s165 = sshll.u32 [#allocation6], 4
          %s166 = int_to_ptr.vmem [resolvable:$true] %s165
          %171 = dma.hbm_to_vmem [thread:$0]  %s2, 1024, %s166, [#allocation5], 128, 128, 8
        $region20: #{gauss_filter.2} parent=11 // pred_fallthru
          _
      $region12: #{gauss_filter.2} parent=5 // pred_fallthru
        _
      %p172 = scmp.lt.s32.totalorder %s13, 6
      // Predicated region
      $region21: #{gauss_filter.2} parent=5 // pred_check
        %p173 = pneg %p172
      $region22: #{gauss_filter.2} parent=5 // pred_check_branch
        %175 = sbr.rel (%p173) target = $region24
      $region23: #{gauss_filter.2} parent=5 // pred_region
        // Predicated region
        $region25: #{gauss_filter.2} parent=23 // pred_check
          %p176 = pneg %p47
        $region26: #{gauss_filter.2} parent=23 // pred_check_branch
          %178 = sbr.rel (%p176) target = $region28
        $region27: #{gauss_filter.2} parent=23 // pred_region
          %s179 = sand.u32 %s37, 1
          %s180 = scalar_lea.sflag [#allocation3], %s179
          %s181 = sand.u32 %s37, 1
          %s182 = smul.addr %s181, 64
          %s183 = scalar_lea.vmem [#allocation2], %s182
          %s184 = smul.u32 8, %s21
          %s186 = ssub.s32 1024, 1024
          %187 = vsyncadd %s180, %s186
          %s188 = smul.addr %s20, 8
          %s189 = sadd.s32 %s184, %s188
          %s190 = smul.addr %s189, 128
          %s191 = scalar_lea.hbm %s0, %s190
          %s192 = sshll.u32 %s183, 4
          %s193 = int_to_ptr.vmem [resolvable:$true] %s192
          %198 = dma.hbm_to_vmem [thread:$0]  %s191, 1024, %s193, %s180, 128, 128, 8
        $region28: #{gauss_filter.2} parent=23 // pred_fallthru
          _
      $region24: #{gauss_filter.2} parent=5 // pred_fallthru
        _
      %p199 = scmp.le.s32.totalorder 1, %s13
      %p200 = scmp.lt.s32.totalorder %s13, 7
      %p201 = pnand %p199, %p200
      %p202 = pneg %p201
      // Predicated region
      $region29: #{gauss_filter.2} parent=5 // pred_check
        _
      $region30: #{gauss_filter.2} parent=5 // pred_check_branch
        %204 = sbr.rel (%p201) target = $region32
      $region31: #{gauss_filter.2} parent=5 // pred_region
        %s205 = ssub.s32 %s13, 1
        %s206 = sand.u32 %s40, 1
        %s207 = scalar_lea.sflag [#allocation3], %s206
        %s208 = sand.u32 %s40, 1
        %s209 = smul.addr %s208, 64
        %s210 = scalar_lea.vmem [#allocation2], %s209
        // Predicated region
        $region33: #{gauss_filter.2} parent=31 // pred_check
          %p211 = pneg %p53
        $region34: #{gauss_filter.2} parent=31 // pred_check_branch
          %213 = sbr.rel (%p211) target = $region36
        $region35: #{gauss_filter.2} parent=31 // pred_region
          %214 = dma.done %s207, 1024
        $region36: #{gauss_filter.2} parent=31 // pred_fallthru
          _
        // Predicated region
        $region37: #{gauss_filter.2} parent=31 // pred_check
          %p215 = pneg %p79
        $region38: #{gauss_filter.2} parent=31 // pred_check_branch
          %217 = sbr.rel (%p215) target = $region40
        $region39: #{gauss_filter.2} parent=31 // pred_region
          %218 = dma.done [#allocation5], 1024
        $region40: #{gauss_filter.2} parent=31 // pred_fallthru
          _
        // Predicated region
        $region41: #{gauss_filter.2} parent=31 // pred_check
          %p219 = pneg %p100
        $region42: #{gauss_filter.2} parent=31 // pred_check_branch
          %221 = sbr.rel (%p219) target = $region44
        $region43: #{gauss_filter.2} parent=31 // pred_region
          %222 = dma.done [#allocation5], 1024
        $region44: #{gauss_filter.2} parent=31 // pred_fallthru
          _
        %s223 = sand.u32 %s40, 1
        %s224 = scalar_lea.sflag [#allocation3], %s223
        %s225 = sand.u32 %s40, 1
        %s226 = smul.addr %s225, 64
        %s227 = scalar_lea.vmem [#allocation2], %s226
        %p228 = pneg %p53
        %p229 = pneg %p50
        %p230 = pneg %p79
        %p231 = pneg %p76
        %p232 = pneg %p100
        %p233 = pneg %p97
        %p234 = pneg %p128
        %p235 = pneg %p125
        %p236 = scmp.lt.s32.totalorder %s22, 5
        %s237 = scalar_select %p236, %s22, 5
        %p238 = scmp.lt.s32.totalorder %s23, 0
        %s239 = scalar_select %p238, %s23, 0
        %s240 = sadd.s32 %s239, %s237
        %s241 = smul.addr %s240, 2
        %s242 = scalar_lea.vmem %s3, %s241
        %s243 = smul.u32 8, %s23
        %s244 = smul.u32 8, %s23
        %p245 = scmp.lt.s32.totalorder %s22, 5
        %s246 = scalar_select %p245, %s22, 5
        %p247 = scmp.lt.s32.totalorder %s23, 0
        %s248 = scalar_select %p247, %s23, 0
        %s249 = sadd.s32 %s248, %s246
        %s250 = smul.addr %s249, 2
        %s251 = scalar_lea.vmem %s3, %s250
        %v252 = vld [vmem:[%s210] sm:$0xff]
        %v253 = vld [vmem:[%s210 + $0x8] sm:$0xff]
        %v254 = vld [vmem:[%s210 + $0x10] sm:$0xff]
        %v255 = vld [vmem:[%s210 + $0x18] sm:$0xff]
        %v256 = vld [vmem:[%s210 + $0x20] sm:$0xff]
        %v257 = vld [vmem:[%s210 + $0x28] sm:$0xff]
        %v258 = vld [vmem:[%s210 + $0x30] sm:$0xff]
        %v259 = vld [vmem:[%s210 + $0x38] sm:$0xff]
        %v260 = vld [vmem:[#allocation4] sm:$0xff]
        %v261 = vld [vmem:[#allocation4 + $0x8] sm:$0xff]
        %v262 = vld [vmem:[#allocation4 + $0x10] sm:$0xff]
        %v263 = vld [vmem:[#allocation4 + $0x18] sm:$0xff]
        %v264 = vld [vmem:[#allocation4 + $0x20] sm:$0xff]
        %v265 = vld [vmem:[#allocation4 + $0x28] sm:$0xff]
        %v266 = vld [vmem:[#allocation4 + $0x30] sm:$0xff]
        %v267 = vld [vmem:[#allocation4 + $0x38] sm:$0xff]
        %268 = vxpose.xlu0.b32.start [1/16] %v260, 128
        %269 = vxpose.xlu0.b32.cont [2/16] %v261, 128
        %270 = vxpose.xlu0.b32.cont [3/16] %v262, 128
        %271 = vxpose.xlu0.b32.cont [4/16] %v263, 128
        %272 = vxpose.xlu0.b32.cont [5/16] %v264, 128
        %273 = vxpose.xlu0.b32.cont [6/16] %v265, 128
        %274 = vxpose.xlu0.b32.cont [7/16] %v266, 128
        %275 = vxpose.xlu0.b32.cont [8/16] %v267, 128
        %276 = vxpose.xlu0.b32.cont [9/16] 0.0, 128
        %277 = vxpose.xlu0.b32.cont [10/16] 0.0, 128
        %278 = vxpose.xlu0.b32.cont [11/16] 0.0, 128
        %279 = vxpose.xlu0.b32.cont [12/16] 0.0, 128
        %280 = vxpose.xlu0.b32.cont [13/16] 0.0, 128
        %281 = vxpose.xlu0.b32.cont [14/16] 0.0, 128
        %282 = vxpose.xlu0.b32.cont [15/16] 0.0, 128
        %283 = vxpose.xlu0.b32.end [16/16] 0.0, 128
        %v284 = vpop.trf.xlu0
        %v285 = vpop.trf.xlu0
        %v286 = vpop.trf.xlu0
        %v287 = vpop.trf.xlu0
        %v288 = vpop.trf.xlu0
        %v289 = vpop.trf.xlu0
        %v290 = vpop.trf.xlu0
        %v291 = vpop.trf.xlu0
        %v292 = vpop.trf.xlu0
        %v293 = vpop.trf.xlu0
        %v294 = vpop.trf.xlu0
        %v295 = vpop.trf.xlu0
        %v296 = vpop.trf.xlu0
        %v297 = vpop.trf.xlu0
        %v298 = vpop.trf.xlu0
        %v299 = vpop.trf.xlu0
        %vm300 = vcmask 523264
        %v302 = vsel %vm300, %v284, 0
        %304 = vmatprep.subr.mxu0 0.0
        %305 = vmatpush1.msra.mxu0 %v252
        %306 = vmatprep.subr.mxu0 0.0
        %307 = vmatpush1.msra.mxu0 %v253
        %308 = vmatprep.subr.mxu0 0.0
        %309 = vmatpush1.msra.mxu0 %v254
        %310 = vmatprep.subr.mxu0 0.0
        %311 = vmatpush1.msra.mxu0 %v255
        %312 = vmatprep.subr.mxu0 0.0
        %313 = vmatpush1.msra.mxu0 %v256
        %314 = vmatprep.subr.mxu0 0.0
        %315 = vmatpush1.msra.mxu0 %v257
        %316 = vmatprep.subr.mxu0 0.0
        %317 = vmatpush1.msra.mxu0 %v258
        %318 = vmatprep.subr.mxu0 0.0
        %319 = vmatpush1.msra.mxu0 %v259
        %320 = vmatprep.subr.mxu0 0.0
        %321 = vmatpush1.msra.mxu0 0.0
        %322 = vmatprep.subr.mxu0 0.0
        %323 = vmatpush1.msra.mxu0 0.0
        %324 = vmatprep.subr.mxu0 0.0
        %325 = vmatpush1.msra.mxu0 0.0
        %326 = vmatprep.subr.mxu0 0.0
        %327 = vmatpush1.msra.mxu0 0.0
        %328 = vmatprep.subr.mxu0 0.0
        %329 = vmatpush1.msra.mxu0 0.0
        %330 = vmatprep.subr.mxu0 0.0
        %331 = vmatpush1.msra.mxu0 0.0
        %332 = vmatprep.subr.mxu0 0.0
        %333 = vmatpush1.msra.mxu0 0.0
        %334 = vmatprep.subr.mxu0 0.0
        %335 = vmatpush1.msra.mxu0 0.0
        %336 = vmatprep.subr.mxu0 0.0
        %337 = vmatpush1.msra.mxu0 0.0
        %338 = vmatprep.subr.mxu0 0.0
        %339 = vmatpush1.msra.mxu0 0.0
        %340 = vmatprep.subr.mxu0 0.0
        %341 = vmatpush1.msra.mxu0 0.0
        %342 = vmatprep.subr.mxu0 0.0
        %343 = vmatpush1.msra.mxu0 0.0
        %344 = vmatprep.subr.mxu0 0.0
        %345 = vmatpush1.msra.mxu0 0.0
        %346 = vmatprep.subr.mxu0 0.0
        %347 = vmatpush1.msra.mxu0 0.0
        %348 = vmatprep.subr.mxu0 0.0
        %349 = vmatpush1.msra.mxu0 0.0
        %350 = vmatprep.subr.mxu0 0.0
        %351 = vmatpush1.msra.mxu0 0.0
        %352 = vmatprep.subr.mxu0 0.0
        %353 = vmatpush1.msra.mxu0 0.0
        %354 = vmatprep.subr.mxu0 0.0
        %355 = vmatpush1.msra.mxu0 0.0
        %356 = vmatprep.subr.mxu0 0.0
        %357 = vmatpush1.msra.mxu0 0.0
        %358 = vmatprep.subr.mxu0 0.0
        %359 = vmatpush1.msra.mxu0 0.0
        %360 = vmatprep.subr.mxu0 0.0
        %361 = vmatpush1.msra.mxu0 0.0
        %362 = vmatprep.subr.mxu0 0.0
        %363 = vmatpush1.msra.mxu0 0.0
        %364 = vmatprep.subr.mxu0 0.0
        %365 = vmatpush1.msra.mxu0 0.0
        %366 = vmatprep.subr.mxu0 0.0
        %367 = vmatpush1.msra.mxu0 0.0
        %368 = vmatprep.mubr.f32.mxu0 0.0
        %369 = vmatmul.mubr.f32.gmra.mrb[0].mxu0 %v302
        %v370 = vpop.f32.mrb[0].mxu0
        %v371 = vadd.f32 0.0, %v370
        %v372 = vpop.f32.mrb[0].mxu0
        %373 = vdwg.mxu0
        %v374 = vld [vmem:[#allocation6] sm:$0xff]
        %v375 = vld [vmem:[#allocation6 + $0x8] sm:$0xff]
        %v376 = vld [vmem:[#allocation6 + $0x10] sm:$0xff]
        %v377 = vld [vmem:[#allocation6 + $0x18] sm:$0xff]
        %v378 = vld [vmem:[#allocation6 + $0x20] sm:$0xff]
        %v379 = vld [vmem:[#allocation6 + $0x28] sm:$0xff]
        %v380 = vld [vmem:[#allocation6 + $0x30] sm:$0xff]
        %v381 = vld [vmem:[#allocation6 + $0x38] sm:$0xff]
        %v383 = vsel %vm300, %v371, 0
        %385 = vmatprep.subr.mxu0 0.0
        %386 = vmatpush1.msra.mxu0 %v374
        %387 = vmatprep.subr.mxu0 0.0
        %388 = vmatpush1.msra.mxu0 %v375
        %389 = vmatprep.subr.mxu0 0.0
        %390 = vmatpush1.msra.mxu0 %v376
        %391 = vmatprep.subr.mxu0 0.0
        %392 = vmatpush1.msra.mxu0 %v377
        %393 = vmatprep.subr.mxu0 0.0
        %394 = vmatpush1.msra.mxu0 %v378
        %395 = vmatprep.subr.mxu0 0.0
        %396 = vmatpush1.msra.mxu0 %v379
        %397 = vmatprep.subr.mxu0 0.0
        %398 = vmatpush1.msra.mxu0 %v380
        %399 = vmatprep.subr.mxu0 0.0
        %400 = vmatpush1.msra.mxu0 %v381
        %401 = vmatprep.subr.mxu0 0.0
        %402 = vmatpush1.msra.mxu0 0.0
        %403 = vmatprep.subr.mxu0 0.0
        %404 = vmatpush1.msra.mxu0 0.0
        %405 = vmatprep.subr.mxu0 0.0
        %406 = vmatpush1.msra.mxu0 0.0
        %407 = vmatprep.subr.mxu0 0.0
        %408 = vmatpush1.msra.mxu0 0.0
        %409 = vmatprep.subr.mxu0 0.0
        %410 = vmatpush1.msra.mxu0 0.0
        %411 = vmatprep.subr.mxu0 0.0
        %412 = vmatpush1.msra.mxu0 0.0
        %413 = vmatprep.subr.mxu0 0.0
        %414 = vmatpush1.msra.mxu0 0.0
        %415 = vmatprep.subr.mxu0 0.0
        %416 = vmatpush1.msra.mxu0 0.0
        %417 = vmatprep.subr.mxu0 0.0
        %418 = vmatpush1.msra.mxu0 0.0
        %419 = vmatprep.subr.mxu0 0.0
        %420 = vmatpush1.msra.mxu0 0.0
        %421 = vmatprep.subr.mxu0 0.0
        %422 = vmatpush1.msra.mxu0 0.0
        %423 = vmatprep.subr.mxu0 0.0
        %424 = vmatpush1.msra.mxu0 0.0
        %425 = vmatprep.subr.mxu0 0.0
        %426 = vmatpush1.msra.mxu0 0.0
        %427 = vmatprep.subr.mxu0 0.0
        %428 = vmatpush1.msra.mxu0 0.0
        %429 = vmatprep.subr.mxu0 0.0
        %430 = vmatpush1.msra.mxu0 0.0
        %431 = vmatprep.subr.mxu0 0.0
        %432 = vmatpush1.msra.mxu0 0.0
        %433 = vmatprep.subr.mxu0 0.0
        %434 = vmatpush1.msra.mxu0 0.0
        %435 = vmatprep.subr.mxu0 0.0
        %436 = vmatpush1.msra.mxu0 0.0
        %437 = vmatprep.subr.mxu0 0.0
        %438 = vmatpush1.msra.mxu0 0.0
        %439 = vmatprep.subr.mxu0 0.0
        %440 = vmatpush1.msra.mxu0 0.0
        %441 = vmatprep.subr.mxu0 0.0
        %442 = vmatpush1.msra.mxu0 0.0
        %443 = vmatprep.subr.mxu0 0.0
        %444 = vmatpush1.msra.mxu0 0.0
        %445 = vmatprep.subr.mxu0 0.0
        %446 = vmatpush1.msra.mxu0 0.0
        %447 = vmatprep.subr.mxu0 0.0
        %448 = vmatpush1.msra.mxu0 0.0
        %449 = vmatprep.mubr.f32.mxu0 0.0
        %450 = vmatmul.mubr.f32.gmra.mrb[0].mxu0 %v383
        %v451 = vpop.f32.mrb[0].mxu0
        %v452 = vadd.f32 0.0, %v451
        %v453 = vpop.f32.mrb[0].mxu0
        %454 = vdwg.mxu0
        %vm455 = vcmask 9216
        %456 = vst.msk [vmem:[%s251] sm:$0x3] %vm455, %v452
        %p457 = scmp.lt.s32.totalorder %s22, 5
        %s458 = scalar_select %p457, %s22, 5
        %p459 = scmp.lt.s32.totalorder %s23, 0
        %s460 = scalar_select %p459, %s23, 0
        %s461 = sadd.s32 %s460, %s458
        %s462 = smul.addr %s461, 2
        %s463 = scalar_lea.vmem %s3, %s462
        // Predicated region
        $region45: #{gauss_filter.2} parent=31 // pred_check
          %p464 = pneg %p125
        $region46: #{gauss_filter.2} parent=31 // pred_check_branch
          %466 = sbr.rel (%p464) target = $region48
        $region47: #{gauss_filter.2} parent=31 // pred_region
          _
        $region48: #{gauss_filter.2} parent=31 // pred_fallthru
          _
      $region32: #{gauss_filter.2} parent=5 // pred_fallthru
        _
      %p467 = scmp.le.s32.totalorder 2, %s13
      // Predicated region
      $region49: #{gauss_filter.2} parent=5 // pred_check
        %p468 = pneg %p467
      $region50: #{gauss_filter.2} parent=5 // pred_check_branch
        %470 = sbr.rel (%p468) target = $region52
      $region51: #{gauss_filter.2} parent=5 // pred_region
        %s471 = ssub.s32 %s13, 2
        // Predicated region
        $region53: #{gauss_filter.2} parent=51 // pred_check
          %p472 = pneg %p131
        $region54: #{gauss_filter.2} parent=51 // pred_check_branch
          %474 = sbr.rel (%p472) target = $region56
        $region55: #{gauss_filter.2} parent=51 // pred_region
          %p475 = scmp.lt.s32.totalorder %s24, 5
          %s476 = scalar_select %p475, %s24, 5
          %p477 = scmp.lt.s32.totalorder %s25, 0
          %s478 = scalar_select %p477, %s25, 0
          %s479 = sadd.s32 %s478, %s476
          %s480 = smul.addr %s479, 2
          %s481 = scalar_lea.vmem %s3, %s480
        $region56: #{gauss_filter.2} parent=51 // pred_fallthru
          _
      $region52: #{gauss_filter.2} parent=5 // pred_fallthru
        _
    $region6: #{gauss_filter.2} parent=1 // loop_footer
      %s17 = sadd.s32 1, %s13
    $region7: #{gauss_filter.2} parent=1 // loop_footer_branch
      %12 = sbr.rel target = $region3
    $region8: #{gauss_filter.2} parent=1 // loop_exit
      _
    %482 = vsyncpa [#allocation3], 1
    %s483 = scalar_lea.sflag [#allocation3], 1
    %484 = vsyncpa %s483, 1
    %485 = vsyncpa [#allocation5], 1

// kernel: gauss_filter.3
$region0: #{gauss_filter.3}
  #allocation0 [shape = 'u32[]', space=smem, size = 0x4, offset = 0x4, fixed_abs, tag = 'smem constant byte address 0x4 - core index']
  #allocation1 [shape = 'u32[144,128]{1,0:T(1,128)}', space=vmem, size = 0x12000, scoped, tag = 'internal scratch']
  %s0 = inlined_call_operand.vmem [shape: f32[6,64,2], index: 0, kind: input, shape index: {}]
  %s1 = inlined_call_operand.vmem [shape: f32[2,64], index: 1, kind: input, shape index: {}]
  %s2 = inlined_call_operand.hbm [shape: f32[6,64,64], index: 2, kind: output, shape index: {}]
  %s3 = sld [smem:[#allocation0]]
  $region41: #{gauss_filter.3} parent=0
    _
  %s5 = ssub.s32 1, %s3
  %s6 = scalar_select 0, %s5, %s3
  $region1: #{gauss_filter.3} parent=0
    #allocation2 [shape = 'u8[65536]{0}', space=vmem, size = 0x10000, scoped, tag = 'output window, operand 0']
    #allocation3 [shape = 's32[2]{0}', space=sflag, size = 0x8, scoped, tag = 'scoped memory for gauss_filter.3']
    %7 = vsyncpa [#allocation3], 0
    %s8 = scalar_lea.sflag [#allocation3], 1
    %9 = vsyncpa %s8, 0
    loop: start=0, step=1, limit=8
    $region2: #{gauss_filter.3} parent=1 // loop_pre_header
      _
    $region3: #{gauss_filter.3} parent=1 // loop_header
      %s11 = sphi 0, %s15
      %p12 = scmp.ge.s32.totalorder %s11, 8
      %s18 = sphi 0, %s37
      %s19 = sphi 0, %s33
      %s20 = sphi 0, %s29
      %s21 = sphi 0, %s18
      %s22 = sphi 0, %s19
      %s23 = sphi 0, %s20
      %s24 = sphi 0, %s21
      %s25 = sphi 0, %s22
      %s26 = sphi 0, %s23
      %s42 = sphi 0, %s44
      %s45 = sphi 0, %s42
      %s46 = sphi 0, %s45
      %s62 = sphi 0, %s46
      %s68 = sphi 0, %s70
      %s71 = sphi 0, %s68
      %s72 = sphi 0, %s71
      %s88 = sphi 0, %s72
      %s98 = sphi 0, %s100
      %s101 = sphi 0, %s98
      %s102 = sphi 0, %s101
      %s118 = sphi 0, %s102
    $region4: #{gauss_filter.3} parent=1 // loop_header_branch
      %14 = sbr.rel (%p12) target = $region8
    $region5: #{gauss_filter.3} parent=1 // loop_body
      %s16 = ssub.s32 %s11, 1
      %s17 = ssub.s32 %s11, 2
      %s27 = sadd.s32 1, %s20
      %p28 = scmp.ge.s32.totalorder %s27, 1
      %s29 = scalar_select %p28, 0, %s27
      %s30 = sadd.s32 1, %s19
      %s31 = scalar_select %p28, %s30, %s19
      %p32 = scmp.ge.s32.totalorder %s31, 1
      %s33 = scalar_select %p32, 0, %s31
      %s34 = sadd.s32 1, %s18
      %s35 = scalar_select %p32, %s34, %s18
      %p36 = scmp.ge.s32.totalorder %s35, 6
      %s37 = scalar_select %p36, 0, %s35
      %s38 = ssub.s32 %s18, %s37
      %s39 = ssub.s32 %s19, %s33
      %s40 = sor.u32 %s38, %s39
      %p41 = scmp.eq.s32.totalorder %s40, 0
      %s43 = sadd.s32 %s42, 1
      %s44 = scalar_select %p41, %s42, %s43
      %p47 = pneg %p41
      %p48 = scmp.eq.s32.totalorder %s11, 5
      %p49 = por %p47, %p48
      %p50 = scmp.ne.s32.totalorder %s42, %s45
      %p51 = scmp.eq.s32.totalorder %s11, 0
      %p52 = por %p50, %p51
      %p53 = scmp.ne.s32.totalorder %s42, %s45
      %p54 = scmp.eq.s32.totalorder %s16, 5
      %p55 = por %p53, %p54
      %p56 = scmp.ne.s32.totalorder %s45, %s46
      %p57 = scmp.eq.s32.totalorder %s16, 0
      %p58 = por %p56, %p57
      %p59 = scmp.ne.s32.totalorder %s45, %s46
      %p60 = scmp.eq.s32.totalorder %s17, 5
      %p61 = por %p59, %p60
      %p63 = scmp.ne.s32.totalorder %s46, %s62
      %p64 = scmp.eq.s32.totalorder %s17, 0
      %p65 = por %p63, %p64
      %s66 = ssub.s32 %s20, %s29
      %p67 = scmp.eq.s32.totalorder %s66, 0
      %s69 = sadd.s32 %s68, 1
      %s70 = scalar_select %p67, %s68, %s69
      %p73 = pneg %p67
      %p74 = scmp.eq.s32.totalorder %s11, 5
      %p75 = por %p73, %p74
      %p76 = scmp.ne.s32.totalorder %s68, %s71
      %p77 = scmp.eq.s32.totalorder %s11, 0
      %p78 = por %p76, %p77
      %p79 = scmp.ne.s32.totalorder %s68, %s71
      %p80 = scmp.eq.s32.totalorder %s16, 5
      %p81 = por %p79, %p80
      %p82 = scmp.ne.s32.totalorder %s71, %s72
      %p83 = scmp.eq.s32.totalorder %s16, 0
      %p84 = por %p82, %p83
      %p85 = scmp.ne.s32.totalorder %s71, %s72
      %p86 = scmp.eq.s32.totalorder %s17, 5
      %p87 = por %p85, %p86
      %p89 = scmp.ne.s32.totalorder %s72, %s88
      %p90 = scmp.eq.s32.totalorder %s17, 0
      %p91 = por %p89, %p90
      %s92 = ssub.s32 %s18, %s37
      %s93 = ssub.s32 %s19, %s33
      %s94 = sor.u32 %s92, %s93
      %s95 = ssub.s32 %s20, %s29
      %s96 = sor.u32 %s94, %s95
      %p97 = scmp.eq.s32.totalorder %s96, 0
      %s99 = sadd.s32 %s98, 1
      %s100 = scalar_select %p97, %s98, %s99
      %p103 = pneg %p97
      %p104 = scmp.eq.s32.totalorder %s11, 5
      %p105 = por %p103, %p104
      %p106 = scmp.ne.s32.totalorder %s98, %s101
      %p107 = scmp.eq.s32.totalorder %s11, 0
      %p108 = por %p106, %p107
      %p109 = scmp.ne.s32.totalorder %s98, %s101
      %p110 = scmp.eq.s32.totalorder %s16, 5
      %p111 = por %p109, %p110
      %p112 = scmp.ne.s32.totalorder %s101, %s102
      %p113 = scmp.eq.s32.totalorder %s16, 0
      %p114 = por %p112, %p113
      %p115 = scmp.ne.s32.totalorder %s101, %s102
      %p116 = scmp.eq.s32.totalorder %s17, 5
      %p117 = por %p115, %p116
      %p119 = scmp.ne.s32.totalorder %s102, %s118
      %p120 = scmp.eq.s32.totalorder %s17, 0
      %p121 = por %p119, %p120
      %p122 = scmp.le.s32.totalorder 1, %s11
      %p123 = scmp.lt.s32.totalorder %s11, 7
      %p124 = pnand %p122, %p123
      %p125 = pneg %p124
      // Predicated region
      $region9: #{gauss_filter.3} parent=5 // pred_check
        _
      $region10: #{gauss_filter.3} parent=5 // pred_check_branch
        %127 = sbr.rel (%p124) target = $region12
      $region11: #{gauss_filter.3} parent=5 // pred_region
        %s128 = ssub.s32 %s11, 1
        // Predicated region
        $region13: #{gauss_filter.3} parent=11 // pred_check
          %p129 = pneg %p84
        $region14: #{gauss_filter.3} parent=11 // pred_check_branch
          %131 = sbr.rel (%p129) target = $region16
        $region15: #{gauss_filter.3} parent=11 // pred_region
          %p132 = scmp.lt.s32.totalorder %s23, 0
          %s133 = scalar_select %p132, %s23, 0
          %s134 = smul.addr %s133, 2
          %s135 = scalar_lea.vmem %s1, %s134
        $region16: #{gauss_filter.3} parent=11 // pred_fallthru
          _
      $region12: #{gauss_filter.3} parent=5 // pred_fallthru
        _
      %p136 = scmp.lt.s32.totalorder %s11, 6
      // Predicated region
      $region17: #{gauss_filter.3} parent=5 // pred_check
        %p137 = pneg %p136
      $region18: #{gauss_filter.3} parent=5 // pred_check_branch
        %139 = sbr.rel (%p137) target = $region20
      $region19: #{gauss_filter.3} parent=5 // pred_region
        // Predicated region
        $region21: #{gauss_filter.3} parent=19 // pred_check
          %p140 = pneg %p52
        $region22: #{gauss_filter.3} parent=19 // pred_check_branch
          %142 = sbr.rel (%p140) target = $region24
        $region23: #{gauss_filter.3} parent=19 // pred_region
          %s143 = smul.u32 8, %s19
          %p144 = scmp.lt.s32.totalorder %s18, 5
          %s145 = scalar_select %p144, %s18, 5
          %p146 = scmp.lt.s32.totalorder %s143, 7
          %s147 = scalar_select %p146, %s143, 7
          %s148 = smul.addr %s145, 8
          %s149 = sadd.s32 %s147, %s148
          %s150 = smul.addr %s149, 8
          %s151 = scalar_lea.vmem %s0, %s150
          %s152 = smul.u32 8, %s19
        $region24: #{gauss_filter.3} parent=19 // pred_fallthru
          _
      $region20: #{gauss_filter.3} parent=5 // pred_fallthru
        _
      %p153 = scmp.le.s32.totalorder 1, %s11
      %p154 = scmp.lt.s32.totalorder %s11, 7
      %p155 = pnand %p153, %p154
      %p156 = pneg %p155
      // Predicated region
      $region25: #{gauss_filter.3} parent=5 // pred_check
        _
      $region26: #{gauss_filter.3} parent=5 // pred_check_branch
        %158 = sbr.rel (%p155) target = $region28
      $region27: #{gauss_filter.3} parent=5 // pred_region
        %s159 = ssub.s32 %s11, 1
        %s160 = smul.u32 8, %s22
        %p161 = scmp.lt.s32.totalorder %s21, 5
        %s162 = scalar_select %p161, %s21, 5
        %p163 = scmp.lt.s32.totalorder %s160, 7
        %s164 = scalar_select %p163, %s160, 7
        %s165 = smul.addr %s162, 8
        %s166 = sadd.s32 %s164, %s165
        %s167 = smul.addr %s166, 8
        %s168 = scalar_lea.vmem %s0, %s167
        %p169 = pneg %p58
        %p170 = pneg %p55
        %p171 = scmp.lt.s32.totalorder %s23, 0
        %s172 = scalar_select %p171, %s23, 0
        %s173 = smul.addr %s172, 2
        %s174 = scalar_lea.vmem %s1, %s173
        %p175 = pneg %p84
        %p176 = pneg %p81
        %p177 = pneg %p114
        %p178 = pneg %p111
        %s179 = sand.u32 %s101, 1
        %s180 = scalar_lea.sflag [#allocation3], %s179
        %s181 = sand.u32 %s101, 1
        %s182 = smul.addr %s181, 64
        %s183 = scalar_lea.vmem [#allocation2], %s182
        %s184 = smul.u32 8, %s22
        %p185 = scmp.lt.s32.totalorder %s21, 5
        %s186 = scalar_select %p185, %s21, 5
        %p187 = scmp.lt.s32.totalorder %s184, 7
        %s188 = scalar_select %p187, %s184, 7
        %s189 = smul.addr %s186, 8
        %s190 = sadd.s32 %s188, %s189
        %s191 = smul.addr %s190, 8
        %s192 = scalar_lea.vmem %s0, %s191
        %s193 = smul.u32 8, %s22
        %p194 = scmp.lt.s32.totalorder %s23, 0
        %s195 = scalar_select %p194, %s23, 0
        %s196 = smul.addr %s195, 2
        %s197 = scalar_lea.vmem %s1, %s196
        %s198 = smul.u32 8, %s22
        %v199 = vld [vmem:[%s192] sm:$0xff]
        %v200 = vld [vmem:[%s192 + $0x8] sm:$0xff]
        %v201 = vld [vmem:[%s192 + $0x10] sm:$0xff]
        %v202 = vld [vmem:[%s192 + $0x18] sm:$0xff]
        %v203 = vld [vmem:[%s192 + $0x20] sm:$0xff]
        %v204 = vld [vmem:[%s192 + $0x28] sm:$0xff]
        %v205 = vld [vmem:[%s192 + $0x30] sm:$0xff]
        %v206 = vld [vmem:[%s192 + $0x38] sm:$0xff]
        %v207 = vld [vmem:[%s197] sm:$0x3]
        %vm208 = vcmask 15360
        %v210 = vsel %vm208, %v199, 0
        %v213 = vsel %vm208, %v200, 0
        %v216 = vsel %vm208, %v201, 0
        %v219 = vsel %vm208, %v202, 0
        %v222 = vsel %vm208, %v203, 0
        %v225 = vsel %vm208, %v204, 0
        %v228 = vsel %vm208, %v205, 0
        %v231 = vsel %vm208, %v206, 0
        %vm233 = vcmask 1041408
        %v235 = vsel %vm233, %v207, 0
        %237 = vmatprep.subr.mxu0 0.0
        %238 = vmatpush1.msra.mxu0 %v235
        %239 = vmatprep.subr.mxu0 0.0
        %240 = vmatpush1.msra.mxu0 0.0
        %241 = vmatprep.subr.mxu0 0.0
        %242 = vmatpush1.msra.mxu0 0.0
        %243 = vmatprep.subr.mxu0 0.0
        %244 = vmatpush1.msra.mxu0 0.0
        %245 = vmatprep.subr.mxu0 0.0
        %246 = vmatpush1.msra.mxu0 0.0
        %247 = vmatprep.subr.mxu0 0.0
        %248 = vmatpush1.msra.mxu0 0.0
        %249 = vmatprep.subr.mxu0 0.0
        %250 = vmatpush1.msra.mxu0 0.0
        %251 = vmatprep.subr.mxu0 0.0
        %252 = vmatpush1.msra.mxu0 0.0
        %253 = vmatprep.subr.mxu0 0.0
        %254 = vmatpush1.msra.mxu0 0.0
        %255 = vmatprep.subr.mxu0 0.0
        %256 = vmatpush1.msra.mxu0 0.0
        %257 = vmatprep.subr.mxu0 0.0
        %258 = vmatpush1.msra.mxu0 0.0
        %259 = vmatprep.subr.mxu0 0.0
        %260 = vmatpush1.msra.mxu0 0.0
        %261 = vmatprep.subr.mxu0 0.0
        %262 = vmatpush1.msra.mxu0 0.0
        %263 = vmatprep.subr.mxu0 0.0
        %264 = vmatpush1.msra.mxu0 0.0
        %265 = vmatprep.subr.mxu0 0.0
        %266 = vmatpush1.msra.mxu0 0.0
        %267 = vmatprep.subr.mxu0 0.0
        %268 = vmatpush1.msra.mxu0 0.0
        %269 = vmatprep.subr.mxu0 0.0
        %270 = vmatpush1.msra.mxu0 0.0
        %271 = vmatprep.subr.mxu0 0.0
        %272 = vmatpush1.msra.mxu0 0.0
        %273 = vmatprep.subr.mxu0 0.0
        %274 = vmatpush1.msra.mxu0 0.0
        %275 = vmatprep.subr.mxu0 0.0
        %276 = vmatpush1.msra.mxu0 0.0
        %277 = vmatprep.subr.mxu0 0.0
        %278 = vmatpush1.msra.mxu0 0.0
        %279 = vmatprep.subr.mxu0 0.0
        %280 = vmatpush1.msra.mxu0 0.0
        %281 = vmatprep.subr.mxu0 0.0
        %282 = vmatpush1.msra.mxu0 0.0
        %283 = vmatprep.subr.mxu0 0.0
        %284 = vmatpush1.msra.mxu0 0.0
        %285 = vmatprep.subr.mxu0 0.0
        %286 = vmatpush1.msra.mxu0 0.0
        %287 = vmatprep.subr.mxu0 0.0
        %288 = vmatpush1.msra.mxu0 0.0
        %289 = vmatprep.subr.mxu0 0.0
        %290 = vmatpush1.msra.mxu0 0.0
        %291 = vmatprep.subr.mxu0 0.0
        %292 = vmatpush1.msra.mxu0 0.0
        %293 = vmatprep.subr.mxu0 0.0
        %294 = vmatpush1.msra.mxu0 0.0
        %295 = vmatprep.subr.mxu0 0.0
        %296 = vmatpush1.msra.mxu0 0.0
        %297 = vmatprep.subr.mxu0 0.0
        %298 = vmatpush1.msra.mxu0 0.0
        %299 = vmatprep.subr.mxu0 0.0
        %300 = vmatpush1.msra.mxu0 0.0
        %301 = vmatprep.mubr.f32.mxu0 0.0
        %302 = vmatmul.mubr.f32.gmra.mrb[0].mxu0 %v210
        %v303 = vpop.f32.mrb[0].mxu0
        %v304 = vadd.f32 0.0, %v303
        %v305 = vpop.f32.mrb[0].mxu0
        %306 = vmatprep.mubr.f32.mxu0 0.0
        %307 = vmatmul.mubr.f32.gmra.mrb[0].mxu0 %v213
        %v308 = vpop.f32.mrb[0].mxu0
        %v309 = vadd.f32 0.0, %v308
        %v310 = vpop.f32.mrb[0].mxu0
        %311 = vmatprep.mubr.f32.mxu0 0.0
        %312 = vmatmul.mubr.f32.gmra.mrb[0].mxu0 %v216
        %v313 = vpop.f32.mrb[0].mxu0
        %v314 = vadd.f32 0.0, %v313
        %v315 = vpop.f32.mrb[0].mxu0
        %316 = vmatprep.mubr.f32.mxu0 0.0
        %317 = vmatmul.mubr.f32.gmra.mrb[0].mxu0 %v219
        %v318 = vpop.f32.mrb[0].mxu0
        %v319 = vadd.f32 0.0, %v318
        %v320 = vpop.f32.mrb[0].mxu0
        %321 = vmatprep.mubr.f32.mxu0 0.0
        %322 = vmatmul.mubr.f32.gmra.mrb[0].mxu0 %v222
        %v323 = vpop.f32.mrb[0].mxu0
        %v324 = vadd.f32 0.0, %v323
        %v325 = vpop.f32.mrb[0].mxu0
        %326 = vmatprep.mubr.f32.mxu0 0.0
        %327 = vmatmul.mubr.f32.gmra.mrb[0].mxu0 %v225
        %v328 = vpop.f32.mrb[0].mxu0
        %v329 = vadd.f32 0.0, %v328
        %v330 = vpop.f32.mrb[0].mxu0
        %331 = vmatprep.mubr.f32.mxu0 0.0
        %332 = vmatmul.mubr.f32.gmra.mrb[0].mxu0 %v228
        %v333 = vpop.f32.mrb[0].mxu0
        %v334 = vadd.f32 0.0, %v333
        %v335 = vpop.f32.mrb[0].mxu0
        %336 = vmatprep.mubr.f32.mxu0 0.0
        %337 = vmatmul.mubr.f32.gmra.mrb[0].mxu0 %v231
        %v338 = vpop.f32.mrb[0].mxu0
        %v339 = vadd.f32 0.0, %v338
        %v340 = vpop.f32.mrb[0].mxu0
        %341 = vdwg.mxu0
        %vm342 = vcmask 523264
        %343 = vst.msk [vmem:[%s183] sm:$0xff] %vm342, %v304
        %344 = vst.msk [vmem:[%s183 + $0x8] sm:$0xff] %vm342, %v309
        %345 = vst.msk [vmem:[%s183 + $0x10] sm:$0xff] %vm342, %v314
        %346 = vst.msk [vmem:[%s183 + $0x18] sm:$0xff] %vm342, %v319
        %347 = vst.msk [vmem:[%s183 + $0x20] sm:$0xff] %vm342, %v324
        %348 = vst.msk [vmem:[%s183 + $0x28] sm:$0xff] %vm342, %v329
        %349 = vst.msk [vmem:[%s183 + $0x30] sm:$0xff] %vm342, %v334
        %350 = vst.msk [vmem:[%s183 + $0x38] sm:$0xff] %vm342, %v339
        %s351 = sand.u32 %s101, 1
        %s352 = scalar_lea.sflag [#allocation3], %s351
        %s353 = sand.u32 %s101, 1
        %s354 = smul.addr %s353, 64
        %s355 = scalar_lea.vmem [#allocation2], %s354
        // Predicated region
        $region29: #{gauss_filter.3} parent=27 // pred_check
          %p356 = pneg %p111
        $region30: #{gauss_filter.3} parent=27 // pred_check_branch
          %358 = sbr.rel (%p356) target = $region32
        $region31: #{gauss_filter.3} parent=27 // pred_region
          %s359 = smul.u32 8, %s22
          %s361 = ssub.s32 1024, 1024
          %362 = vsyncadd %s352, %s361
          %s363 = sadd.s32 %s23, %s359
          %s364 = smul.addr %s21, 8
          %s365 = sadd.s32 %s363, %s364
          %s366 = smul.addr %s365, 128
          %s367 = scalar_lea.hbm %s2, %s366
          %s368 = sshll.u32 %s355, 4
          %s369 = int_to_ptr.vmem [resolvable:$true] %s368
          %374 = dma.vmem_to_hbm [thread:$0]  %s369, 1024, %s367, %s352, 128, 128, 8
        $region32: #{gauss_filter.3} parent=27 // pred_fallthru
          _
      $region28: #{gauss_filter.3} parent=5 // pred_fallthru
        _
      %p375 = scmp.le.s32.totalorder 2, %s11
      // Predicated region
      $region33: #{gauss_filter.3} parent=5 // pred_check
        %p376 = pneg %p375
      $region34: #{gauss_filter.3} parent=5 // pred_check_branch
        %378 = sbr.rel (%p376) target = $region36
      $region35: #{gauss_filter.3} parent=5 // pred_region
        %s379 = ssub.s32 %s11, 2
        // Predicated region
        $region37: #{gauss_filter.3} parent=35 // pred_check
          %p380 = pneg %p117
        $region38: #{gauss_filter.3} parent=35 // pred_check_branch
          %382 = sbr.rel (%p380) target = $region40
        $region39: #{gauss_filter.3} parent=35 // pred_region
          %s383 = sand.u32 %s102, 1
          %s384 = scalar_lea.sflag [#allocation3], %s383
          %s385 = sand.u32 %s102, 1
          %s386 = smul.addr %s385, 64
          %s387 = scalar_lea.vmem [#allocation2], %s386
          %388 = dma.done %s384, 1024
        $region40: #{gauss_filter.3} parent=35 // pred_fallthru
          _
      $region36: #{gauss_filter.3} parent=5 // pred_fallthru
        _
    $region6: #{gauss_filter.3} parent=1 // loop_footer
      %s15 = sadd.s32 1, %s11
    $region7: #{gauss_filter.3} parent=1 // loop_footer_branch
      %10 = sbr.rel target = $region3
    $region8: #{gauss_filter.3} parent=1 // loop_exit
      _
    %389 = vsyncpa [#allocation3], 1
    %s390 = scalar_lea.sflag [#allocation3], 1
    %391 = vsyncpa %s390, 1

</llo_original>
